<compile_context>
chip_gen: v5e
topology: v5e:2x2
jax: 0.10.0
libtpu: 0.0.40
codegen_flags: <defaults>
</compile_context>

<pallas_src>
import jax
import jax.numpy as jnp
from jax.experimental import pallas as pl
from jax.experimental.pallas import tpu as pltpu


def _se_kernel(x_ref, w1t_ref, w2_ref, o_ref, sum_ref):
    """One grid step = one lane-dense HW tile of one batch element.

    x_ref   : (1, C, THW)  input tile (streamed)
    w1t_ref : (C, Cr)      fc1 weight, pre-transposed (PyTorch weight is (Cr, C))
    w2_ref  : (C, Cr)      fc2 weight (PyTorch layout)
    o_ref   : (1, C, HW)   output block, resident across the HW-tile axis
    sum_ref : (C, 1) f32   running channel sums (VMEM scratch)
    """
    t = pl.program_id(1)
    n_t = pl.num_programs(1)
    thw = x_ref.shape[2]
    hw = o_ref.shape[2]

    x_tile = x_ref[0]                                    # (C, THW), native dtype

    @pl.when(t == 0)
    def _init():
        sum_ref[...] = jnp.zeros_like(sum_ref)

    # Accumulate channel sums in f32 (cross-lane reduce -> XLU slot).
    sum_ref[...] += jnp.sum(x_tile.astype(jnp.float32), axis=1, keepdims=True)

    # Stage the tile into the resident output block; rescaled in place at the end.
    start = pl.multiple_of(t * thw, thw)
    o_ref[0, :, pl.ds(start, thw)] = x_tile

    @pl.when(t == n_t - 1)
    def _finalize():
        # Squeeze: global average over the true HW extent (block covers full HW).
        y = sum_ref[...] * (1.0 / float(hw))                        # (C, 1)
        # Excitation on the VPU/XLU (tiny shapes; keep the MXU out of it).
        # fc1 (bias-free) + ReLU:   h[j] = relu(sum_c W1[j, c] * y[c])
        h = jnp.sum(w1t_ref[...] * y, axis=0, keepdims=True)        # (1, Cr)
        h = jnp.maximum(h, 0.0)
        # fc2 (bias-free) + sigmoid: s[c] = sigmoid(sum_j W2[c, j] * h[j])
        s = jnp.sum(w2_ref[...] * h, axis=1, keepdims=True)         # (C, 1)
        s = jax.nn.sigmoid(s)                                       # EUP
        # Scale the resident block in the native dtype (bf16 stays bf16).
        o_ref[0] = o_ref[0] * s.astype(o_ref.dtype)


def _choose_hw_tile(hw, c, itemsize, max_tile_bytes=2 * 1024 * 1024):
    """Largest lane-dense (multiple-of-128) tile dividing HW with the per-tile
    DMA under max_tile_bytes; falls back to the full HW extent."""
    if hw % 128 != 0:
        return hw
    divisors = [m for m in range(128, hw + 1, 128) if hw % m == 0]
    fitting = [m for m in divisors if c * m * itemsize <= max_tile_bytes]
    return fitting[-1] if fitting else divisors[0]


def se_block(x, w1, w2, *, tile_hw=None):
    """SE_Block forward: x * sigmoid(W2 @ relu(W1 @ avgpool(x))).

    x  : (B, C, H, W)
    w1 : (Cr, C)  -- nn.Linear(C,  Cr, bias=False).weight
    w2 : (C, Cr)  -- nn.Linear(Cr, C,  bias=False).weight
    """
    B, C, H, W = x.shape
    Cr = w1.shape[0]
    HW = H * W
    itemsize = jnp.dtype(x.dtype).itemsize

    if tile_hw is None:
        tile_hw = _choose_hw_tile(HW, C, itemsize)
    assert HW % tile_hw == 0, "tile_hw must divide H*W"
    assert tile_hw == HW or tile_hw % 128 == 0, "tile_hw must be lane-aligned"
    n_t = HW // tile_hw

    x_flat = x.reshape(B, C, HW)
    w1t = jnp.transpose(w1)                              # (C, Cr)

    # VMEM budget: double-buffered resident output block + double-buffered
    # input tile + params/scratch.  Cap at 64 MiB so the config is v7x-safe.
    block_bytes = 2 * C * HW * itemsize + 2 * C * tile_hw * itemsize
    block_bytes += 2 * C * Cr * 4 + C * 4
    vmem_limit = int(min(64 * 1024 * 1024, max(32 * 1024 * 1024, 2 * block_bytes)))

    out = pl.pallas_call(
        _se_kernel,
        out_shape=jax.ShapeDtypeStruct((B, C, HW), x.dtype),
        grid_spec=pltpu.PrefetchScalarGridSpec(
            num_scalar_prefetch=0,
            grid=(B, n_t),
            in_specs=[
                pl.BlockSpec((1, C, tile_hw), lambda b, t: (b, 0, t)),  # x tiles
                pl.BlockSpec((C, Cr), lambda b, t: (0, 0)),             # W1^T
                pl.BlockSpec((C, Cr), lambda b, t: (0, 0)),             # W2
            ],
            out_specs=pl.BlockSpec((1, C, HW), lambda b, t: (b, 0, 0)),
            scratch_shapes=[pltpu.VMEM((C, 1), jnp.float32)],
        ),
        compiler_params=pltpu.CompilerParams(
            dimension_semantics=("parallel", "arbitrary"),
            vmem_limit_bytes=vmem_limit,
        ),
        input_output_aliases={0: 0},
    )(x_flat, w1t, w2)

    return out.reshape(B, C, H, W)


def se_block_ref(x, w1, w2):
    """Pure-JAX reference mirroring the PyTorch SE_Block forward."""
    xf = x.astype(jnp.float32)
    y = jnp.mean(xf, axis=(2, 3))                        # (B, C)
    h = jnp.maximum(y @ w1.T, 0.0)                       # (B, Cr)
    s = jax.nn.sigmoid(h @ w2.T)                         # (B, C)
    return (xf * s[:, :, None, None]).astype(x.dtype)


if __name__ == "__main__":
    key = jax.random.PRNGKey(0)

    def make_case(k, B, C, H, W, reduction):
        kx, k1, k2 = jax.random.split(k, 3)
        Cr = max(C // reduction, 1)
        x = jax.random.normal(kx, (B, C, H, W), dtype=jnp.float32)
        w1 = jax.random.normal(k1, (Cr, C), dtype=jnp.float32) * 0.2
        w2 = jax.random.normal(k2, (C, Cr), dtype=jnp.float32) * 0.2
        return x, w1, w2

    ka, kb = jax.random.split(key)

    # Case 1: SE_Block as used by FeaBlock (reduction=8), lane-dense HW=256.
    x, w1, w2 = make_case(ka, 2, 32, 16, 16, 8)
    ref = se_block_ref(x, w1, w2)            # compute ref before (input may be aliased)
    out = jax.block_until_ready(se_block(x, w1, w2))
    assert out.shape == x.shape
    assert jnp.allclose(out, ref, atol=1e-5, rtol=1e-5), "case 1 mismatch"

    # Case 2: exercises the multi-tile reduction path (grid = (2, 4)).
    x, w1, w2 = make_case(kb, 2, 16, 32, 32, 8)
    ref = se_block_ref(x, w1, w2)
    out = jax.block_until_ready(se_block(x, w1, w2, tile_hw=256))
    assert out.shape == x.shape
    assert jnp.allclose(out, ref, atol=1e-5, rtol=1e-5), "case 2 mismatch"

    print("KERNEL_OK")
</pallas_src>

<mosaic_0001>
module attributes {stable_mosaic.version = 11 : i64} {
  func.func @_se_kernel(%arg0: i32, %arg1: i32, %arg2: memref<1x32x256xf32, #tpu.memory_space<vmem>>, %arg3: memref<32x4xf32, #tpu.memory_space<vmem>>, %arg4: memref<32x4xf32, #tpu.memory_space<vmem>>, %arg5: memref<1x32x256xf32, #tpu.memory_space<vmem>>, %arg6: memref<32x1xf32, #tpu.memory_space<vmem>>) attributes {dimension_semantics = [#tpu.dimension_semantics<parallel>, #tpu.dimension_semantics<arbitrary>], iteration_bounds = array<i64: 2, 1>, scalar_prefetch = 0 : i64, scratch_operands = 1 : i64, tpu.core_type = #tpu.core_type<tc>, window_params = [{transform_indices = @transform_0, window_bounds = array<i64: 1, 32, 256>}, {pipeline_mode = #tpu.pipeline_mode<synchronous>, transform_indices = @transform_1, window_bounds = array<i64: 32, 4>}, {pipeline_mode = #tpu.pipeline_mode<synchronous>, transform_indices = @transform_2, window_bounds = array<i64: 32, 4>}, {transform_indices = @transform_3, window_bounds = array<i64: 1, 32, 256>}]} {
    %c0 = arith.constant 0 : index
    %c0_0 = arith.constant 0 : index
    %c0_1 = arith.constant 0 : index
    %0 = vector.load %arg2[%c0, %c0_0, %c0_1] : memref<1x32x256xf32, #tpu.memory_space<vmem>>, vector<1x32x256xf32>
    %1 = vector.shape_cast %0 : vector<1x32x256xf32> to vector<32x256xf32>
    %c0_i32 = arith.constant 0 : i32
    %2 = arith.cmpi eq, %arg1, %c0_i32 : i32
    %3 = arith.extui %2 : i1 to i32
    %c0_i32_2 = arith.constant 0 : i32
    %4 = arith.cmpi ne, %3, %c0_i32_2 : i32
    scf.if %4 {
      %cst_11 = arith.constant 0.000000e+00 : f32
      %19 = vector.broadcast %cst_11 : f32 to vector<32x1xf32>
      %c0_12 = arith.constant 0 : index
      %c0_13 = arith.constant 0 : index
      %20 = vector.load %arg6[%c0_12, %c0_13] : memref<32x1xf32, #tpu.memory_space<vmem>>, vector<32x1xf32>
      tpu.vector_store %arg6[%c0_12, %c0_13], %19 {strides = array<i32>} : memref<32x1xf32, #tpu.memory_space<vmem>>, vector<32x1xf32>,
    } else {
    }
    %c0_3 = arith.constant 0 : index
    %c0_4 = arith.constant 0 : index
    %5 = vector.load %arg6[%c0_3, %c0_4] : memref<32x1xf32, #tpu.memory_space<vmem>>, vector<32x1xf32>
    %cst = arith.constant dense<0.000000e+00> : vector<32xf32>
    %6 = vector.multi_reduction <add>, %1, %cst [1] : vector<32x256xf32> to vector<32xf32>
    %7 = vector.shape_cast %6 : vector<32xf32> to vector<32x1xf32>
    %8 = arith.addf %5, %7 : vector<32x1xf32>
    %c0_5 = arith.constant 0 : index
    %c0_6 = arith.constant 0 : index
    %9 = vector.load %arg6[%c0_5, %c0_6] : memref<32x1xf32, #tpu.memory_space<vmem>>, vector<32x1xf32>
    tpu.vector_store %arg6[%c0_5, %c0_6], %8 {strides = array<i32>} : memref<32x1xf32, #tpu.memory_space<vmem>>, vector<32x1xf32>,
    %c256_i32 = arith.constant 256 : i32
    %10 = arith.muli %arg1, %c256_i32 : i32
    %11 = tpu.assume_multiple %10, 256 : i32
    %c0_7 = arith.constant 0 : index
    %c0_8 = arith.constant 0 : index
    %12 = arith.index_cast %11 : i32 to index
    %13 = vector.load %arg5[%c0_7, %c0_8, %12] : memref<1x32x256xf32, #tpu.memory_space<vmem>>, vector<1x32x256xf32>
    %14 = vector.shape_cast %13 : vector<1x32x256xf32> to vector<32x256xf32>
    %15 = vector.shape_cast %1 : vector<32x256xf32> to vector<1x32x256xf32>
    tpu.vector_store %arg5[%c0_7, %c0_8, %12], %15 {strides = array<i32>} : memref<1x32x256xf32, #tpu.memory_space<vmem>>, vector<1x32x256xf32>,
    %c0_i32_9 = arith.constant 0 : i32
    %16 = arith.cmpi eq, %arg1, %c0_i32_9 : i32
    %17 = arith.extui %16 : i1 to i32
    %c0_i32_10 = arith.constant 0 : i32
    %18 = arith.cmpi ne, %17, %c0_i32_10 : i32
    scf.if %18 {
      %c0_11 = arith.constant 0 : index
      %c0_12 = arith.constant 0 : index
      %19 = vector.load %arg6[%c0_11, %c0_12] : memref<32x1xf32, #tpu.memory_space<vmem>>, vector<32x1xf32>
      %cst_13 = arith.constant 3.906250e-03 : f32
      %20 = vector.broadcast %cst_13 : f32 to vector<32x1xf32>
      %21 = arith.mulf %19, %20 : vector<32x1xf32>
      %c0_14 = arith.constant 0 : index
      %c0_15 = arith.constant 0 : index
      %22 = vector.load %arg3[%c0_14, %c0_15] : memref<32x4xf32, #tpu.memory_space<vmem>>, vector<32x4xf32>
      %23 = vector.broadcast %21 : vector<32x1xf32> to vector<32x4xf32>
      %24 = arith.mulf %22, %23 : vector<32x4xf32>
      %cst_16 = arith.constant dense<0.000000e+00> : vector<4xf32>
      %25 = vector.multi_reduction <add>, %24, %cst_16 [0] : vector<32x4xf32> to vector<4xf32>
      %26 = vector.shape_cast %25 : vector<4xf32> to vector<1x4xf32>
      %cst_17 = arith.constant 0.000000e+00 : f32
      %27 = vector.broadcast %cst_17 : f32 to vector<1x4xf32>
      %28 = arith.maximumf %26, %27 : vector<1x4xf32>
      %c0_18 = arith.constant 0 : index
      %c0_19 = arith.constant 0 : index
      %29 = vector.load %arg4[%c0_18, %c0_19] : memref<32x4xf32, #tpu.memory_space<vmem>>, vector<32x4xf32>
      %30 = vector.broadcast %28 : vector<1x4xf32> to vector<32x4xf32>
      %31 = arith.mulf %29, %30 : vector<32x4xf32>
      %cst_20 = arith.constant dense<0.000000e+00> : vector<32xf32>
      %32 = vector.multi_reduction <add>, %31, %cst_20 [1] : vector<32x4xf32> to vector<32xf32>
      %33 = vector.shape_cast %32 : vector<32xf32> to vector<32x1xf32>
      %34 = arith.negf %33 : vector<32x1xf32>
      %35 = math.exp %34 : vector<32x1xf32>
      %cst_21 = arith.constant 1.000000e+00 : f32
      %36 = vector.broadcast %cst_21 : f32 to vector<32x1xf32>
      %37 = arith.addf %36, %35 : vector<32x1xf32>
      %38 = arith.divf %36, %37 : vector<32x1xf32>
      %c0_22 = arith.constant 0 : index
      %c0_23 = arith.constant 0 : index
      %c0_24 = arith.constant 0 : index
      %39 = vector.load %arg5[%c0_22, %c0_23, %c0_24] : memref<1x32x256xf32, #tpu.memory_space<vmem>>, vector<1x32x256xf32>
      %40 = vector.shape_cast %39 : vector<1x32x256xf32> to vector<32x256xf32>
      %41 = vector.broadcast %38 : vector<32x1xf32> to vector<32x256xf32>
      %42 = arith.mulf %40, %41 : vector<32x256xf32>
      %c0_25 = arith.constant 0 : index
      %c0_26 = arith.constant 0 : index
      %c0_27 = arith.constant 0 : index
      %43 = vector.load %arg5[%c0_25, %c0_26, %c0_27] : memref<1x32x256xf32, #tpu.memory_space<vmem>>, vector<1x32x256xf32>
      %44 = vector.shape_cast %43 : vector<1x32x256xf32> to vector<32x256xf32>
      %45 = vector.shape_cast %42 : vector<32x256xf32> to vector<1x32x256xf32>
      tpu.vector_store %arg5[%c0_25, %c0_26, %c0_27], %45 {strides = array<i32>} : memref<1x32x256xf32, #tpu.memory_space<vmem>>, vector<1x32x256xf32>,
    } else {
    }
    return
  }
  func.func @transform_0(%arg0: i32, %arg1: i32) -> (i32, i32, i32) {
    %c0_i32 = arith.constant 0 : i32
    %c0_i32_0 = arith.constant 0 : i32
    return %arg0, %c0_i32, %arg1 : i32, i32, i32
  }
  func.func @transform_1(%arg0: i32, %arg1: i32) -> (i32, i32) {
    %c0_i32 = arith.constant 0 : i32
    %c0_i32_0 = arith.constant 0 : i32
    %c0_i32_1 = arith.constant 0 : i32
    return %c0_i32, %c0_i32_0 : i32, i32
  }
  func.func @transform_2(%arg0: i32, %arg1: i32) -> (i32, i32) {
    %c0_i32 = arith.constant 0 : i32
    %c0_i32_0 = arith.constant 0 : i32
    %c0_i32_1 = arith.constant 0 : i32
    return %c0_i32, %c0_i32_0 : i32, i32
  }
  func.func @transform_3(%arg0: i32, %arg1: i32) -> (i32, i32, i32) {
    %c0_i32 = arith.constant 0 : i32
    %c0_i32_0 = arith.constant 0 : i32
    %c0_i32_1 = arith.constant 0 : i32
    return %arg0, %c0_i32, %c0_i32_0 : i32, i32, i32
  }
}

</mosaic_0001>

<llo_original>
// kernel: tpu_custom_call.1
$region0: #{tpu_custom_call.1}
  #allocation0 [shape = 'u32[]', space=smem, size = 0x4, offset = 0x4, fixed_abs, tag = 'smem constant byte address 0x4 - core index']
  #allocation1 [shape = 'u32[72,128]{1,0:T(1,128)}', space=vmem, size = 0x9000, scoped, tag = 'internal scratch']
  #allocation2 [shape = 'f32[32,1]{1,0:T(8,128)}', space=vmem, size = 0x4000, scoped, tag = 'scratch operand']
  %s0 = inlined_call_operand.hbm [shape: f32[2,32,256], index: 0, kind: input, shape index: {}, may-alias: {0,3}]
  %s1 = inlined_call_operand.vmem [shape: f32[32,4], index: 1, kind: input, shape index: {}]
  %s2 = inlined_call_operand.vmem [shape: f32[32,4], index: 2, kind: input, shape index: {}]
  %s3 = inlined_call_operand.hbm [shape: f32[2,32,256], index: 3, kind: output, shape index: {}, may-alias: {0,3}]
  %s4 = sld [smem:[#allocation0]]
  $region57: #{tpu_custom_call.1} parent=0
    _
  %s6 = ssub.s32 1, %s4
  %s7 = scalar_select 0, %s6, %s4
  $region1: #{tpu_custom_call.1} parent=0
    #allocation3 [shape = 'u8[65536]{0}', space=vmem, size = 0x10000, scoped, tag = 'input window, operand 0']
    #allocation4 [shape = 's32[2]{0}', space=sflag, size = 0x8, scoped, tag = 'scoped memory for tpu_custom_call.1']
    #allocation5 [shape = 's32[2]{0}', space=sflag, size = 0x8, scoped, tag = 'scoped memory for tpu_custom_call.1']
    #allocation6 [shape = 'u8[65536]{0}', space=vmem, size = 0x10000, scoped, tag = 'output window, operand 0']
    %8 = vsyncpa [#allocation4], 0
    %s9 = scalar_lea.sflag [#allocation4], 1
    %10 = vsyncpa %s9, 0
    %11 = vsyncpa [#allocation5], 0
    %s12 = scalar_lea.sflag [#allocation5], 1
    %13 = vsyncpa %s12, 0
    loop: start=0, step=1, limit=4
    $region2: #{tpu_custom_call.1} parent=1 // loop_pre_header
      _
    $region3: #{tpu_custom_call.1} parent=1 // loop_header
      %s15 = sphi 0, %s19
      %p16 = scmp.ge.s32.totalorder %s15, 4
      %s22 = sphi 0, %s34
      %s23 = sphi 0, %s30
      %s24 = sphi 0, %s22
      %s25 = sphi 0, %s23
      %s26 = sphi 0, %s24
      %s27 = sphi 0, %s25
      %s39 = sphi 0, %s41
      %s42 = sphi 0, %s39
      %s43 = sphi 0, %s42
      %s59 = sphi 0, %s43
      %s63 = sphi 0, %s63
      %s65 = sphi 0, %s63
      %s66 = sphi 0, %s65
      %s80 = sphi 0, %s66
      %s84 = sphi 0, %s84
      %s86 = sphi 0, %s84
      %s87 = sphi 0, %s86
      %s101 = sphi 0, %s87
      %s107 = sphi 0, %s109
      %s110 = sphi 0, %s107
      %s111 = sphi 0, %s110
      %s127 = sphi 0, %s111
    $region4: #{tpu_custom_call.1} parent=1 // loop_header_branch
      %18 = sbr.rel (%p16) target = $region8
    $region5: #{tpu_custom_call.1} parent=1 // loop_body
      %s20 = ssub.s32 %s15, 1
      %s21 = ssub.s32 %s15, 2
      %s28 = sadd.s32 1, %s23
      %p29 = scmp.ge.s32.totalorder %s28, 1
      %s30 = scalar_select %p29, 0, %s28
      %s31 = sadd.s32 1, %s22
      %s32 = scalar_select %p29, %s31, %s22
      %p33 = scmp.ge.s32.totalorder %s32, 2
      %s34 = scalar_select %p33, 0, %s32
      %s35 = ssub.s32 %s22, %s34
      %s36 = ssub.s32 %s23, %s30
      %s37 = sor.u32 %s35, %s36
      %p38 = scmp.eq.s32.totalorder %s37, 0
      %s40 = sadd.s32 %s39, 1
      %s41 = scalar_select %p38, %s39, %s40
      %p44 = pneg %p38
      %p45 = scmp.eq.s32.totalorder %s15, 1
      %p46 = por %p44, %p45
      %p47 = scmp.ne.s32.totalorder %s39, %s42
      %p48 = scmp.eq.s32.totalorder %s15, 0
      %p49 = por %p47, %p48
      %p50 = scmp.ne.s32.totalorder %s39, %s42
      %p51 = scmp.eq.s32.totalorder %s20, 1
      %p52 = por %p50, %p51
      %p53 = scmp.ne.s32.totalorder %s42, %s43
      %p54 = scmp.eq.s32.totalorder %s20, 0
      %p55 = por %p53, %p54
      %p56 = scmp.ne.s32.totalorder %s42, %s43
      %p57 = scmp.eq.s32.totalorder %s21, 1
      %p58 = por %p56, %p57
      %p60 = scmp.ne.s32.totalorder %s43, %s59
      %p61 = scmp.eq.s32.totalorder %s21, 0
      %p62 = por %p60, %p61
      %s64 = sadd.s32 %s63, 1
      %p67 = scmp.eq.s32.totalorder %s15, 1
      %p68 = scmp.ne.s32.totalorder %s63, %s65
      %p69 = scmp.eq.s32.totalorder %s15, 0
      %p70 = por %p68, %p69
      %p71 = scmp.ne.s32.totalorder %s63, %s65
      %p72 = scmp.eq.s32.totalorder %s20, 1
      %p73 = por %p71, %p72
      %p74 = scmp.ne.s32.totalorder %s65, %s66
      %p75 = scmp.eq.s32.totalorder %s20, 0
      %p76 = por %p74, %p75
      %p77 = scmp.ne.s32.totalorder %s65, %s66
      %p78 = scmp.eq.s32.totalorder %s21, 1
      %p79 = por %p77, %p78
      %p81 = scmp.ne.s32.totalorder %s66, %s80
      %p82 = scmp.eq.s32.totalorder %s21, 0
      %p83 = por %p81, %p82
      %s85 = sadd.s32 %s84, 1
      %p88 = scmp.eq.s32.totalorder %s15, 1
      %p89 = scmp.ne.s32.totalorder %s84, %s86
      %p90 = scmp.eq.s32.totalorder %s15, 0
      %p91 = por %p89, %p90
      %p92 = scmp.ne.s32.totalorder %s84, %s86
      %p93 = scmp.eq.s32.totalorder %s20, 1
      %p94 = por %p92, %p93
      %p95 = scmp.ne.s32.totalorder %s86, %s87
      %p96 = scmp.eq.s32.totalorder %s20, 0
      %p97 = por %p95, %p96
      %p98 = scmp.ne.s32.totalorder %s86, %s87
      %p99 = scmp.eq.s32.totalorder %s21, 1
      %p100 = por %p98, %p99
      %p102 = scmp.ne.s32.totalorder %s87, %s101
      %p103 = scmp.eq.s32.totalorder %s21, 0
      %p104 = por %p102, %p103
      %s105 = ssub.s32 %s22, %s34
      %p106 = scmp.eq.s32.totalorder %s105, 0
      %s108 = sadd.s32 %s107, 1
      %s109 = scalar_select %p106, %s107, %s108
      %p112 = pneg %p106
      %p113 = scmp.eq.s32.totalorder %s15, 1
      %p114 = por %p112, %p113
      %p115 = scmp.ne.s32.totalorder %s107, %s110
      %p116 = scmp.eq.s32.totalorder %s15, 0
      %p117 = por %p115, %p116
      %p118 = scmp.ne.s32.totalorder %s107, %s110
      %p119 = scmp.eq.s32.totalorder %s20, 1
      %p120 = por %p118, %p119
      %p121 = scmp.ne.s32.totalorder %s110, %s111
      %p122 = scmp.eq.s32.totalorder %s20, 0
      %p123 = por %p121, %p122
      %p124 = scmp.ne.s32.totalorder %s110, %s111
      %p125 = scmp.eq.s32.totalorder %s21, 1
      %p126 = por %p124, %p125
      %p128 = scmp.ne.s32.totalorder %s111, %s127
      %p129 = scmp.eq.s32.totalorder %s21, 0
      %p130 = por %p128, %p129
      %p131 = scmp.le.s32.totalorder 1, %s15
      %p132 = scmp.lt.s32.totalorder %s15, 3
      %p133 = pnand %p131, %p132
      %p134 = pneg %p133
      // Predicated region
      $region9: #{tpu_custom_call.1} parent=5 // pred_check
        _
      $region10: #{tpu_custom_call.1} parent=5 // pred_check_branch
        %136 = sbr.rel (%p133) target = $region12
      $region11: #{tpu_custom_call.1} parent=5 // pred_region
        %s137 = ssub.s32 %s15, 1
        // Predicated region
        $region13: #{tpu_custom_call.1} parent=11 // pred_check
          %p138 = pneg %p76
        $region14: #{tpu_custom_call.1} parent=11 // pred_check_branch
          %140 = sbr.rel (%p138) target = $region16
        $region15: #{tpu_custom_call.1} parent=11 // pred_region
          _
        $region16: #{tpu_custom_call.1} parent=11 // pred_fallthru
          _
        // Predicated region
        $region17: #{tpu_custom_call.1} parent=11 // pred_check
          %p141 = pneg %p97
        $region18: #{tpu_custom_call.1} parent=11 // pred_check_branch
          %143 = sbr.rel (%p141) target = $region20
        $region19: #{tpu_custom_call.1} parent=11 // pred_region
          _
        $region20: #{tpu_custom_call.1} parent=11 // pred_fallthru
          _
      $region12: #{tpu_custom_call.1} parent=5 // pred_fallthru
        _
      %p144 = scmp.lt.s32.totalorder %s15, 2
      // Predicated region
      $region21: #{tpu_custom_call.1} parent=5 // pred_check
        %p145 = pneg %p144
      $region22: #{tpu_custom_call.1} parent=5 // pred_check_branch
        %147 = sbr.rel (%p145) target = $region24
      $region23: #{tpu_custom_call.1} parent=5 // pred_region
        // Predicated region
        $region25: #{tpu_custom_call.1} parent=23 // pred_check
          %p148 = pneg %p49
        $region26: #{tpu_custom_call.1} parent=23 // pred_check_branch
          %150 = sbr.rel (%p148) target = $region28
        $region27: #{tpu_custom_call.1} parent=23 // pred_region
          %s151 = sand.u32 %s39, 1
          %s152 = scalar_lea.sflag [#allocation4], %s151
          %s153 = sand.u32 %s39, 1
          %s154 = smul.addr %s153, 64
          %s155 = scalar_lea.vmem [#allocation3], %s154
          %s156 = smul.u32 2, %s23
          %158 = vsyncadd %s152, 0
          %s159 = smul.addr %s22, 8
          %s160 = sadd.s32 %s156, %s159
          %s161 = smul.addr %s160, 8
          %s162 = scalar_lea.hbm %s0, %s161
          %s163 = sshll.u32 %s162, 4
          %s164 = int_to_ptr.hbm [resolvable:$true] %s163
          %s165 = sshll.u32 %s155, 4
          %s166 = int_to_ptr.vmem [resolvable:$true] %s165
          %171 = dma.hbm_to_vmem [thread:$0]  %s164, 1024, %s166, %s152, 256, 256, 16
        $region28: #{tpu_custom_call.1} parent=23 // pred_fallthru
          _
      $region24: #{tpu_custom_call.1} parent=5 // pred_fallthru
        _
      %p172 = scmp.le.s32.totalorder 1, %s15
      %p173 = scmp.lt.s32.totalorder %s15, 3
      %p174 = pnand %p172, %p173
      %p175 = pneg %p174
      // Predicated region
      $region29: #{tpu_custom_call.1} parent=5 // pred_check
        _
      $region30: #{tpu_custom_call.1} parent=5 // pred_check_branch
        %177 = sbr.rel (%p174) target = $region32
      $region31: #{tpu_custom_call.1} parent=5 // pred_region
        %s178 = ssub.s32 %s15, 1
        %s179 = sand.u32 %s42, 1
        %s180 = scalar_lea.sflag [#allocation4], %s179
        %s181 = sand.u32 %s42, 1
        %s182 = smul.addr %s181, 64
        %s183 = scalar_lea.vmem [#allocation3], %s182
        // Predicated region
        $region33: #{tpu_custom_call.1} parent=31 // pred_check
          %p184 = pneg %p55
        $region34: #{tpu_custom_call.1} parent=31 // pred_check_branch
          %186 = sbr.rel (%p184) target = $region36
        $region35: #{tpu_custom_call.1} parent=31 // pred_region
          %188 = dma.done %s180, 1024
        $region36: #{tpu_custom_call.1} parent=31 // pred_fallthru
          _
        %s189 = sand.u32 %s42, 1
        %s190 = scalar_lea.sflag [#allocation4], %s189
        %s191 = sand.u32 %s42, 1
        %s192 = smul.addr %s191, 64
        %s193 = scalar_lea.vmem [#allocation3], %s192
        %p194 = pneg %p55
        %p195 = pneg %p52
        %p196 = pneg %p76
        %p197 = pneg %p73
        %p198 = pneg %p97
        %p199 = pneg %p94
        %p200 = pneg %p123
        %p201 = pneg %p120
        %s202 = sand.u32 %s110, 1
        %s203 = scalar_lea.sflag [#allocation5], %s202
        %s204 = sand.u32 %s110, 1
        %s205 = smul.addr %s204, 64
        %s206 = scalar_lea.vmem [#allocation6], %s205
        %s207 = smul.u32 2, %s25
        %v208 = vld [vmem:[%s183] sm:$0xff]
        %v209 = vld [vmem:[%s183 + $0x8] sm:$0xff]
        %v210 = vld [vmem:[%s183 + $0x10] sm:$0xff]
        %v211 = vld [vmem:[%s183 + $0x18] sm:$0xff]
        %v212 = vld [vmem:[%s183 + $0x20] sm:$0xff]
        %v213 = vld [vmem:[%s183 + $0x28] sm:$0xff]
        %v214 = vld [vmem:[%s183 + $0x30] sm:$0xff]
        %v215 = vld [vmem:[%s183 + $0x38] sm:$0xff]
        %p216 = scmp.eq.s32.totalorder %s25, 0
        // Predicated region
        $region37: #{tpu_custom_call.1} parent=31 // pred_check
          %p217 = pneg %p216
        $region38: #{tpu_custom_call.1} parent=31 // pred_check_branch
          %219 = sbr.rel (%p217) target = $region40
        $region39: #{tpu_custom_call.1} parent=31 // pred_region
          %vm220 = vcmask 7168
          %221 = vst.msk [vmem:[#allocation2] sm:$0xff] %vm220, 0.0
          %222 = vst.msk [vmem:[#allocation2 + $0x8] sm:$0xff] %vm220, 0.0
          %223 = vst.msk [vmem:[#allocation2 + $0x10] sm:$0xff] %vm220, 0.0
          %224 = vst.msk [vmem:[#allocation2 + $0x18] sm:$0xff] %vm220, 0.0
        $region40: #{tpu_custom_call.1} parent=31 // pred_fallthru
          _
        %v225 = vld [vmem:[#allocation2] sm:$0xff]
        %v226 = vld [vmem:[#allocation2 + $0x8] sm:$0xff]
        %v227 = vld [vmem:[#allocation2 + $0x10] sm:$0xff]
        %v228 = vld [vmem:[#allocation2 + $0x18] sm:$0xff]
        %v229 = vadd.f32 %v208, %v209
        %230 = vadd.xlane.f32.xlu0 %v229
        %v231 = vpop.xlane.xlu0 %230
        %v232 = vadd.f32 %v210, %v211
        %233 = vadd.xlane.f32.xlu0 %v232
        %v234 = vpop.xlane.xlu0 %233
        %v235 = vadd.f32 %v212, %v213
        %236 = vadd.xlane.f32.xlu0 %v235
        %v237 = vpop.xlane.xlu0 %236
        %v238 = vadd.f32 %v214, %v215
        %239 = vadd.xlane.f32.xlu0 %v238
        %v240 = vpop.xlane.xlu0 %239
        %v241 = vadd.f32 %v225, %v231
        %v242 = vadd.f32 %v226, %v234
        %v243 = vadd.f32 %v227, %v237
        %v244 = vadd.f32 %v228, %v240
        %vm245 = vcmask 7168
        %246 = vst.msk [vmem:[#allocation2] sm:$0xff] %vm245, %v241
        %247 = vst.msk [vmem:[#allocation2 + $0x8] sm:$0xff] %vm245, %v242
        %248 = vst.msk [vmem:[#allocation2 + $0x10] sm:$0xff] %vm245, %v243
        %249 = vst.msk [vmem:[#allocation2 + $0x18] sm:$0xff] %vm245, %v244
        %s250 = smul.u32 %s25, 256
        %s251 = sshra.s32 %s250, 7
        %s252 = sand.u32 %s250, 127
        %s253 = smul.addr %s251, 8
        %s254 = scalar_lea.vmem %s206, %s253 [#allocation6]
        %255 = vst [vmem:[%s254] sm:$0xff] %v208
        %256 = vst [vmem:[%s254 + $0x8] sm:$0xff] %v209
        %257 = vst [vmem:[%s254 + $0x10] sm:$0xff] %v210
        %258 = vst [vmem:[%s254 + $0x18] sm:$0xff] %v211
        %259 = vst [vmem:[%s254 + $0x20] sm:$0xff] %v212
        %260 = vst [vmem:[%s254 + $0x28] sm:$0xff] %v213
        %261 = vst [vmem:[%s254 + $0x30] sm:$0xff] %v214
        %262 = vst [vmem:[%s254 + $0x38] sm:$0xff] %v215
        // Predicated region
        $region41: #{tpu_custom_call.1} parent=31 // pred_check
          %p263 = pneg %p216
        $region42: #{tpu_custom_call.1} parent=31 // pred_check_branch
          %265 = sbr.rel (%p263) target = $region44
        $region43: #{tpu_custom_call.1} parent=31 // pred_region
          %v266 = vld [vmem:[#allocation2] sm:$0xff]
          %v267 = vld [vmem:[#allocation2 + $0x8] sm:$0xff]
          %v268 = vld [vmem:[#allocation2 + $0x10] sm:$0xff]
          %v269 = vld [vmem:[#allocation2 + $0x18] sm:$0xff]
          %v270 = vmul.f32 %v266, 0.00390625
          %v271 = vmul.f32 %v267, 0.00390625
          %v272 = vmul.f32 %v268, 0.00390625
          %v273 = vmul.f32 %v269, 0.00390625
          %v274 = vld [vmem:[%s1] sm:$0xff]
          %v275 = vld [vmem:[%s1 + $0x8] sm:$0xff]
          %v276 = vld [vmem:[%s1 + $0x10] sm:$0xff]
          %v277 = vld [vmem:[%s1 + $0x18] sm:$0xff]
          %279 = vset.pattern.permute.xlu0 0
          %280 = vperm.xlu0 %279, %v270
          %v281 = vpop.permute.xlu0 %280
          %284 = vset.pattern.permute.xlu0 0
          %285 = vperm.xlu0 %284, %v271
          %v286 = vpop.permute.xlu0 %285
          %289 = vset.pattern.permute.xlu0 0
          %290 = vperm.xlu0 %289, %v272
          %v291 = vpop.permute.xlu0 %290
          %294 = vset.pattern.permute.xlu0 0
          %295 = vperm.xlu0 %294, %v273
          %v296 = vpop.permute.xlu0 %295
          %v298 = vmul.f32 %v274, %v281
          %v299 = vmul.f32 %v275, %v286
          %v300 = vmul.f32 %v276, %v291
          %v301 = vmul.f32 %v277, %v296
          %vm302 = vcmask 31744
          %v303 = vsel %vm302, %v298, 0.0
          %v304 = vsel %vm302, %v299, 0.0
          %v305 = vadd.f32 %v303, %v304
          %v306 = vsel %vm302, %v300, 0.0
          %v307 = vadd.f32 %v305, %v306
          %v308 = vsel %vm302, %v301, 0.0
          %v309 = vadd.f32 %v307, %v308
          %v310 = vrot.slane %v309, 4
          %v311 = vadd.f32 %v309, %v310
          %v312 = vrot.slane %v311, 2
          %v313 = vadd.f32 %v311, %v312
          %v314 = vrot.slane %v313, 1
          %v315 = vadd.f32 %v313, %v314
          %v316 = vmax.f32 %v315, 0.0
          %v317 = vld [vmem:[%s2] sm:$0xff]
          %v318 = vld [vmem:[%s2 + $0x8] sm:$0xff]
          %v319 = vld [vmem:[%s2 + $0x10] sm:$0xff]
          %v320 = vld [vmem:[%s2 + $0x18] sm:$0xff]
          %v321 = vmul.f32 %v317, %v316
          %v322 = vmul.f32 %v318, %v316
          %v323 = vmul.f32 %v319, %v316
          %v324 = vmul.f32 %v320, %v316
          %v325 = vsel %vm302, %v321, 0.0
          %326 = vadd.xlane.f32.xlu0 %v325
          %v327 = vpop.xlane.xlu0 %326
          %v328 = vsel %vm302, %v322, 0.0
          %329 = vadd.xlane.f32.xlu0 %v328
          %v330 = vpop.xlane.xlu0 %329
          %v331 = vsel %vm302, %v323, 0.0
          %332 = vadd.xlane.f32.xlu0 %v331
          %v333 = vpop.xlane.xlu0 %332
          %v334 = vsel %vm302, %v324, 0.0
          %335 = vadd.xlane.f32.xlu0 %v334
          %v336 = vpop.xlane.xlu0 %335
          %v337 = vxor.u32 %v327, 2147483648
          %v338 = vxor.u32 %v330, 2147483648
          %v339 = vxor.u32 %v333, 2147483648
          %v340 = vxor.u32 %v336, 2147483648
          %v341 = vmul.f32 %v337, 1.442695
          %v342 = vpow.pop %v341
          %v343 = vmul.f32 %v338, 1.442695
          %v344 = vpow.pop %v343
          %v345 = vmul.f32 %v339, 1.442695
          %v346 = vpow.pop %v345
          %v347 = vmul.f32 %v340, 1.442695
          %v348 = vpow.pop %v347
          %v349 = vadd.f32 %v342, 1.0
          %v350 = vadd.f32 %v344, 1.0
          %v351 = vadd.f32 %v346, 1.0
          %v352 = vadd.f32 %v348, 1.0
          %v353 = vrcp.pop %v349
          %v354 = vmul.f32 %v349, %v353
          %v355 = vsub.f32 1.0, %v354
          %v356 = vmul.f32 %v353, %v355
          %v357 = vadd.f32 %v353, %v356
          %vm358 = vweird.f32 %v349
          %vm359 = vweird.f32 %v353
          %vm360 = vmor %vm358, %vm359
          %v361 = vsel %vm360, %v353, %v357
          %v362 = vand.u32 2147483647, %v349
          %vm363 = vcmp.eq.f32.partialorder %v362, 8.507059e+37
          %v364 = vand.u32 %v349, 2147483648
          %v365 = vor.u32 1.1754944e-38, %v364
          %v366 = vsel %vm363, %v365, %v361
          %v367 = vmul.f32 1.0, %v366
          %v368 = vrcp.pop %v350
          %v369 = vmul.f32 %v350, %v368
          %v370 = vsub.f32 1.0, %v369
          %v371 = vmul.f32 %v368, %v370
          %v372 = vadd.f32 %v368, %v371
          %vm373 = vweird.f32 %v350
          %vm374 = vweird.f32 %v368
          %vm375 = vmor %vm373, %vm374
          %v376 = vsel %vm375, %v368, %v372
          %v377 = vand.u32 2147483647, %v350
          %vm378 = vcmp.eq.f32.partialorder %v377, 8.507059e+37
          %v379 = vand.u32 %v350, 2147483648
          %v380 = vor.u32 1.1754944e-38, %v379
          %v381 = vsel %vm378, %v380, %v376
          %v382 = vmul.f32 1.0, %v381
          %v383 = vrcp.pop %v351
          %v384 = vmul.f32 %v351, %v383
          %v385 = vsub.f32 1.0, %v384
          %v386 = vmul.f32 %v383, %v385
          %v387 = vadd.f32 %v383, %v386
          %vm388 = vweird.f32 %v351
          %vm389 = vweird.f32 %v383
          %vm390 = vmor %vm388, %vm389
          %v391 = vsel %vm390, %v383, %v387
          %v392 = vand.u32 2147483647, %v351
          %vm393 = vcmp.eq.f32.partialorder %v392, 8.507059e+37
          %v394 = vand.u32 %v351, 2147483648
          %v395 = vor.u32 1.1754944e-38, %v394
          %v396 = vsel %vm393, %v395, %v391
          %v397 = vmul.f32 1.0, %v396
          %v398 = vrcp.pop %v352
          %v399 = vmul.f32 %v352, %v398
          %v400 = vsub.f32 1.0, %v399
          %v401 = vmul.f32 %v398, %v400
          %v402 = vadd.f32 %v398, %v401
          %vm403 = vweird.f32 %v352
          %vm404 = vweird.f32 %v398
          %vm405 = vmor %vm403, %vm404
          %v406 = vsel %vm405, %v398, %v402
          %v407 = vand.u32 2147483647, %v352
          %vm408 = vcmp.eq.f32.partialorder %v407, 8.507059e+37
          %v409 = vand.u32 %v352, 2147483648
          %v410 = vor.u32 1.1754944e-38, %v409
          %v411 = vsel %vm408, %v410, %v406
          %v412 = vmul.f32 1.0, %v411
          %v413 = vld [vmem:[%s206] sm:$0xff]
          %v414 = vld [vmem:[%s206 + $0x8] sm:$0xff]
          %v415 = vld [vmem:[%s206 + $0x10] sm:$0xff]
          %v416 = vld [vmem:[%s206 + $0x18] sm:$0xff]
          %v417 = vld [vmem:[%s206 + $0x20] sm:$0xff]
          %v418 = vld [vmem:[%s206 + $0x28] sm:$0xff]
          %v419 = vld [vmem:[%s206 + $0x30] sm:$0xff]
          %v420 = vld [vmem:[%s206 + $0x38] sm:$0xff]
          %v421 = vmul.f32 %v413, %v367
          %v422 = vmul.f32 %v414, %v367
          %v423 = vmul.f32 %v415, %v382
          %v424 = vmul.f32 %v416, %v382
          %v425 = vmul.f32 %v417, %v397
          %v426 = vmul.f32 %v418, %v397
          %v427 = vmul.f32 %v419, %v412
          %v428 = vmul.f32 %v420, %v412
          %429 = vst [vmem:[%s206] sm:$0xff] %v421
          %430 = vst [vmem:[%s206 + $0x8] sm:$0xff] %v422
          %431 = vst [vmem:[%s206 + $0x10] sm:$0xff] %v423
          %432 = vst [vmem:[%s206 + $0x18] sm:$0xff] %v424
          %433 = vst [vmem:[%s206 + $0x20] sm:$0xff] %v425
          %434 = vst [vmem:[%s206 + $0x28] sm:$0xff] %v426
          %435 = vst [vmem:[%s206 + $0x30] sm:$0xff] %v427
          %436 = vst [vmem:[%s206 + $0x38] sm:$0xff] %v428
        $region44: #{tpu_custom_call.1} parent=31 // pred_fallthru
          _
        %s437 = sand.u32 %s110, 1
        %s438 = scalar_lea.sflag [#allocation5], %s437
        %s439 = sand.u32 %s110, 1
        %s440 = smul.addr %s439, 64
        %s441 = scalar_lea.vmem [#allocation6], %s440
        // Predicated region
        $region45: #{tpu_custom_call.1} parent=31 // pred_check
          %p442 = pneg %p120
        $region46: #{tpu_custom_call.1} parent=31 // pred_check_branch
          %444 = sbr.rel (%p442) target = $region48
        $region47: #{tpu_custom_call.1} parent=31 // pred_region
          %446 = vsyncadd %s438, 0
          %s447 = smul.addr %s24, 8
          %s448 = smul.addr %s447, 8
          %s449 = scalar_lea.hbm %s3, %s448
          %s450 = sshll.u32 %s441, 4
          %s451 = int_to_ptr.vmem [resolvable:$true] %s450
          %s452 = sshll.u32 %s449, 4
          %s453 = int_to_ptr.hbm [resolvable:$true] %s452
          %458 = dma.vmem_to_hbm [thread:$0]  %s451, 1024, %s453, %s438, 256, 256, 16
        $region48: #{tpu_custom_call.1} parent=31 // pred_fallthru
          _
      $region32: #{tpu_custom_call.1} parent=5 // pred_fallthru
        _
      %p459 = scmp.le.s32.totalorder 2, %s15
      // Predicated region
      $region49: #{tpu_custom_call.1} parent=5 // pred_check
        %p460 = pneg %p459
      $region50: #{tpu_custom_call.1} parent=5 // pred_check_branch
        %462 = sbr.rel (%p460) target = $region52
      $region51: #{tpu_custom_call.1} parent=5 // pred_region
        %s463 = ssub.s32 %s15, 2
        // Predicated region
        $region53: #{tpu_custom_call.1} parent=51 // pred_check
          %p464 = pneg %p126
        $region54: #{tpu_custom_call.1} parent=51 // pred_check_branch
          %466 = sbr.rel (%p464) target = $region56
        $region55: #{tpu_custom_call.1} parent=51 // pred_region
          %s467 = sand.u32 %s111, 1
          %s468 = scalar_lea.sflag [#allocation5], %s467
          %s469 = sand.u32 %s111, 1
          %s470 = smul.addr %s469, 64
          %s471 = scalar_lea.vmem [#allocation6], %s470
          %473 = dma.done %s468, 1024
        $region56: #{tpu_custom_call.1} parent=51 // pred_fallthru
          _
      $region52: #{tpu_custom_call.1} parent=5 // pred_fallthru
        _
    $region6: #{tpu_custom_call.1} parent=1 // loop_footer
      %s19 = sadd.s32 1, %s15
    $region7: #{tpu_custom_call.1} parent=1 // loop_footer_branch
      %14 = sbr.rel target = $region3
    $region8: #{tpu_custom_call.1} parent=1 // loop_exit
      _
    %474 = vsyncpa [#allocation4], 1
    %s475 = scalar_lea.sflag [#allocation4], 1
    %476 = vsyncpa %s475, 1
    %477 = vsyncpa [#allocation5], 1
    %s478 = scalar_lea.sflag [#allocation5], 1
    %479 = vsyncpa %s478, 1

</llo_original>
